<compile_context>
chip_gen: v5e
topology: v5e:2x2
jax: 0.10.0
libtpu: 0.0.40
codegen_flags: <defaults>
</compile_context>

<pallas_src>
import jax
import jax.numpy as jnp
from jax.experimental import pallas as pl
from jax.experimental.pallas import tpu as pltpu


_VMEM = pl.BlockSpec(memory_space=pltpu.MemorySpace.VMEM)
_LANE = 128


def _round_up(x, m):
    return (x + m - 1) // m * m


# ----------------------------- fused Pallas kernel ---------------------------

def _make_fused_kernel(layer_count):
    """Build the fused decoder-step kernel for a fixed layer count.

    Ref order:
      inputs : tok (B,1) i32, hidden (L,B,HP), cell (L,B,HP), embedding (V,EP),
               [w_cat_l (INP_l+HP, 4HP), b_l (1,4HP)] * L, out_w_t (HP,VP),
               out_b (1,VP)
      outputs: pred (B,VP), h_new (L,B,HP), c_new (L,B,HP)
    All lane dims (EP, HP, VP) are multiples of 128.
    """

    def kernel(*refs):
        tok_ref, h_ref, c_ref, emb_ref = refs[:4]
        lrefs = refs[4:4 + 2 * layer_count]
        out_w_ref, out_b_ref = refs[4 + 2 * layer_count:6 + 2 * layer_count]
        pred_ref, h_out_ref, c_out_ref = refs[6 + 2 * layer_count:]

        B = tok_ref.shape[0]
        V = emb_ref.shape[0]
        HP = h_ref.shape[-1]              # lane-padded hidden size

        # ---- embedding lookup, in-kernel, as a one-hot matmul on the MXU ----
        tok = tok_ref[...]                                        # (B, 1) int32
        vocab_iota = jax.lax.broadcasted_iota(jnp.int32, (B, V), 1)
        onehot = (tok == vocab_iota).astype(jnp.float32)          # (B, V)
        x = jnp.dot(onehot, emb_ref[...],
                    preferred_element_type=jnp.float32)           # (B, EP)
        # TODO(synk): nn.Dropout is identity in eval mode; training dropout
        # masks are not reproduced here.

        # Load the full state up-front (values), so the in-place (aliased)
        # state writes below can never race with state reads.
        h_all = h_ref[...]                                        # (L, B, HP)
        c_all = c_ref[...]

        # ---- L LSTM layers, fully unrolled (L is small) ----------------------
        for l in range(layer_count):
            w_ref = lrefs[2 * l]                                  # (INP+HP, 4HP)
            b_ref = lrefs[2 * l + 1]                              # (1, 4HP)
            h_prev = h_all[l]                                     # (B, HP)
            c_prev = c_all[l]                                     # (B, HP)

            # 128-aligned lane concat -> single fused gate matmul (deep K).
            xh = jnp.concatenate([x, h_prev], axis=-1)            # (B, INP+HP)
            gates = (jnp.dot(xh, w_ref[...],
                             preferred_element_type=jnp.float32)
                     + b_ref[...])                                # (B, 4HP)

            # Gate blocks are 128-lane aligned -> clean vreg slices.
            i_g = jax.nn.sigmoid(gates[:, 0 * HP:1 * HP])
            f_g = jax.nn.sigmoid(gates[:, 1 * HP:2 * HP])
            g_g = jnp.tanh(gates[:, 2 * HP:3 * HP])
            o_g = jax.nn.sigmoid(gates[:, 3 * HP:4 * HP])

            c_new = f_g * c_prev + i_g * g_g
            h_new = o_g * jnp.tanh(c_new)

            h_out_ref[l] = h_new.astype(h_out_ref.dtype)
            c_out_ref[l] = c_new.astype(c_out_ref.dtype)
            x = h_new  # inter-layer dropout is identity in eval mode

        # ---- output projection (lane-dense: VP is a multiple of 128) --------
        pred_ref[...] = (jnp.dot(x, out_w_ref[...],
                                 preferred_element_type=jnp.float32)
                         + out_b_ref[...]).astype(pred_ref.dtype)

    return kernel


# ----------------------------- wrapper ---------------------------------------

def lstm_decoder_forward(params, tokens, hidden, cell):
    """Fused Pallas implementation of LSTMDecoder.forward.

    tokens: (B,) int32; hidden, cell: (L, B, H) f32.
    Returns (pred (B, V), hidden_new (L, B, H), cell_new (L, B, H)).

    NOTE: the (internally lane-padded) hidden/cell buffers are aliased to the
    state outputs (in-place update); if H is already a multiple of 128 the
    caller's hidden/cell arrays are aliased directly and must not be reused.
    """
    L, B, H = hidden.shape
    V = params["output_size"]
    fused = params["fused"]
    HP, VP = fused["out_w_t"].shape

    if HP != H:  # lane-pad the carried state (no-op at realistic sizes)
        pad = ((0, 0), (0, 0), (0, HP - H))
        hidden_p = jnp.pad(hidden, pad)
        cell_p = jnp.pad(cell, pad)
    else:
        hidden_p, cell_p = hidden, cell

    tok2d = tokens.reshape(B, 1).astype(jnp.int32)

    layer_args = []
    for w, b in zip(fused["layer_w"], fused["layer_b"]):
        layer_args += [w, b]

    n_inputs = 4 + len(layer_args) + 2

    pred_pad, h_new, c_new = pl.pallas_call(
        _make_fused_kernel(L),
        out_shape=(jax.ShapeDtypeStruct((B, VP), jnp.float32),
                   jax.ShapeDtypeStruct((L, B, HP), jnp.float32),
                   jax.ShapeDtypeStruct((L, B, HP), jnp.float32)),
        in_specs=[_VMEM] * n_inputs,
        out_specs=(_VMEM, _VMEM, _VMEM),
        input_output_aliases={1: 1, 2: 2},  # hidden->h_new, cell->c_new
    )(tok2d, hidden_p, cell_p, fused["embedding"], *layer_args,
      fused["out_w_t"], fused["out_b"])

    pred = pred_pad[:, :V] if VP != V else pred_pad
    if HP != H:
        h_new = h_new[:, :, :H]
        c_new = c_new[:, :, :H]
    return pred, h_new, c_new


# ------------------------ pure-JAX reference ----------------------------------

def reference_forward(params, tokens, hidden, cell):
    H = params["hidden_size"]
    x = jnp.take(params["embedding"], tokens, axis=0)
    new_h, new_c = [], []
    for l, lp in enumerate(params["layers"]):
        gates = x @ lp["w_ih_t"] + hidden[l] @ lp["w_hh_t"] + lp["b"]
        i = jax.nn.sigmoid(gates[:, 0 * H:1 * H])
        f = jax.nn.sigmoid(gates[:, 1 * H:2 * H])
        g = jnp.tanh(gates[:, 2 * H:3 * H])
        o = jax.nn.sigmoid(gates[:, 3 * H:4 * H])
        c_l = f * cell[l] + i * g
        h_l = o * jnp.tanh(c_l)
        new_h.append(h_l)
        new_c.append(c_l)
        x = h_l
    pred = x @ params["out_w_t"] + params["out_b"]
    return pred, jnp.stack(new_h, 0), jnp.stack(new_c, 0)


# ------------------------------ params ----------------------------------------

def init_params(key, output_size, emb_size, hidden_size, layer_count):
    V, E, H = output_size, emb_size, hidden_size
    EP = _round_up(E, _LANE)
    HP = _round_up(H, _LANE)
    VP = _round_up(V, _LANE)

    ks = jax.random.split(key, 3 + 4 * layer_count)
    scale = 1.0 / jnp.sqrt(H)

    embedding = jax.random.normal(ks[0], (V, E), jnp.float32)
    out_w_t = jax.random.uniform(ks[1], (H, V), jnp.float32, -scale, scale)
    out_b = jax.random.uniform(ks[2], (1, V), jnp.float32, -scale, scale)

    params = {
        "output_size": V,
        "emb_size": E,
        "hidden_size": H,
        # unpadded weights (reference path)
        "embedding": embedding,
        "out_w_t": out_w_t,
        "out_b": out_b,
        "layers": [],
        # lane-aligned, pre-fused weights (kernel path)
        "fused": {
            "embedding": jnp.zeros((V, EP), jnp.float32).at[:, :E].set(embedding),
            "out_w_t": jnp.zeros((HP, VP), jnp.float32).at[:H, :V].set(out_w_t),
            "out_b": jnp.zeros((1, VP), jnp.float32).at[:, :V].set(out_b),
            "layer_w": [],
            "layer_b": [],
        },
    }

    for l in range(layer_count):
        in_size = E if l == 0 else H
        INP = EP if l == 0 else HP
        k0, k1, k2, k3 = ks[3 + 4 * l:3 + 4 * (l + 1)]
        wih_t = jax.random.uniform(k0, (in_size, 4 * H), jnp.float32, -scale, scale)
        whh_t = jax.random.uniform(k1, (H, 4 * H), jnp.float32, -scale, scale)
        b_ih = jax.random.uniform(k2, (1, 4 * H), jnp.float32, -scale, scale)
        b_hh = jax.random.uniform(k3, (1, 4 * H), jnp.float32, -scale, scale)
        b_sum = b_ih + b_hh

        params["layers"].append({"w_ih_t": wih_t, "w_hh_t": whh_t, "b": b_sum})

        # Pre-fused [W_ih^T ; W_hh^T] with each of the 4 gates in its own
        # 128-aligned lane block of width HP; padded rows/cols are zero so the
        # padded state lanes stay exactly zero through the recurrence.
        w_pad = jnp.zeros((INP + HP, 4 * HP), jnp.float32)
        b_pad = jnp.zeros((1, 4 * HP), jnp.float32)
        for g in range(4):
            w_pad = w_pad.at[:in_size, g * HP:g * HP + H].set(
                wih_t[:, g * H:(g + 1) * H])
            w_pad = w_pad.at[INP:INP + H, g * HP:g * HP + H].set(
                whh_t[:, g * H:(g + 1) * H])
            b_pad = b_pad.at[:, g * HP:g * HP + H].set(
                b_sum[:, g * H:(g + 1) * H])
        params["fused"]["layer_w"].append(w_pad)
        params["fused"]["layer_b"].append(b_pad)

    return params


# ------------------------------ main -------------------------------------------

if __name__ == "__main__":
    OUTPUT_SIZE = 64   # vocab
    EMB_SIZE = 32
    HIDDEN_SIZE = 32
    LAYER_COUNT = 2
    BATCH = 8

    key = jax.random.PRNGKey(0)
    kp, kt, kh, kc = jax.random.split(key, 4)

    params = init_params(kp, OUTPUT_SIZE, EMB_SIZE, HIDDEN_SIZE, LAYER_COUNT)
    tokens = jax.random.randint(kt, (BATCH,), 0, OUTPUT_SIZE, jnp.int32)
    hidden = jax.random.normal(kh, (LAYER_COUNT, BATCH, HIDDEN_SIZE),
                               jnp.float32)
    cell = jax.random.normal(kc, (LAYER_COUNT, BATCH, HIDDEN_SIZE),
                             jnp.float32)

    # Reference first (the fused kernel aliases its padded state buffers).
    pred_r, h_r, c_r = reference_forward(params, tokens, hidden, cell)
    jax.block_until_ready((pred_r, h_r, c_r))

    pred, h_new, c_new = lstm_decoder_forward(params, tokens, hidden, cell)
    jax.block_until_ready((pred, h_new, c_new))

    assert pred.shape == (BATCH, OUTPUT_SIZE)
    assert h_new.shape == (LAYER_COUNT, BATCH, HIDDEN_SIZE)
    assert c_new.shape == (LAYER_COUNT, BATCH, HIDDEN_SIZE)
    assert jnp.allclose(pred, pred_r, atol=2e-5, rtol=1e-5)
    assert jnp.allclose(h_new, h_r, atol=2e-5, rtol=1e-5)
    assert jnp.allclose(c_new, c_r, atol=2e-5, rtol=1e-5)

    print("KERNEL_OK")
</pallas_src>

<mosaic_0001>
module attributes {stable_mosaic.version = 11 : i64} {
  func.func @kernel(%arg0: memref<8x1xi32, #tpu.memory_space<vmem>>, %arg1: memref<2x8x128xf32, #tpu.memory_space<vmem>>, %arg2: memref<2x8x128xf32, #tpu.memory_space<vmem>>, %arg3: memref<64x128xf32, #tpu.memory_space<vmem>>, %arg4: memref<256x512xf32, #tpu.memory_space<vmem>>, %arg5: memref<1x512xf32, #tpu.memory_space<vmem>>, %arg6: memref<256x512xf32, #tpu.memory_space<vmem>>, %arg7: memref<1x512xf32, #tpu.memory_space<vmem>>, %arg8: memref<128x128xf32, #tpu.memory_space<vmem>>, %arg9: memref<1x128xf32, #tpu.memory_space<vmem>>, %arg10: memref<8x128xf32, #tpu.memory_space<vmem>>, %arg11: memref<2x8x128xf32, #tpu.memory_space<vmem>>, %arg12: memref<2x8x128xf32, #tpu.memory_space<vmem>>) attributes {dimension_semantics = [], scalar_prefetch = 0 : i64, scratch_operands = 0 : i64, tpu.core_type = #tpu.core_type<tc>} {
    %c0 = arith.constant 0 : index
    %c0_0 = arith.constant 0 : index
    %0 = vector.load %arg0[%c0, %c0_0] : memref<8x1xi32, #tpu.memory_space<vmem>>, vector<8x1xi32>
    %1 = tpu.iota {dimensions = array<i32: 1>} : vector<8x64xi32>
    %2 = vector.broadcast %0 : vector<8x1xi32> to vector<8x64xi32>
    %3 = arith.cmpi eq, %2, %1 : vector<8x64xi32>
    %4 = arith.extui %3 : vector<8x64xi1> to vector<8x64xi32>
    %5 = arith.sitofp %4 : vector<8x64xi32> to vector<8x64xf32>
    %c0_1 = arith.constant 0 : index
    %c0_2 = arith.constant 0 : index
    %6 = vector.load %arg3[%c0_1, %c0_2] : memref<64x128xf32, #tpu.memory_space<vmem>>, vector<64x128xf32>
    %cst = arith.constant dense<0.000000e+00> : vector<8x128xf32>
    %7 = tpu.matmul %5, %6, %cst {dimension_numbers = #tpu.dot_dimension_numbers<[1], [0], [0], [1], [0, 0, 1, 1], [], []>} : vector<8x64xf32>, vector<64x128xf32>, vector<8x128xf32> -> vector<8x128xf32>
    %c0_3 = arith.constant 0 : index
    %c0_4 = arith.constant 0 : index
    %c0_5 = arith.constant 0 : index
    %8 = vector.load %arg1[%c0_3, %c0_4, %c0_5] : memref<2x8x128xf32, #tpu.memory_space<vmem>>, vector<2x8x128xf32>
    %c0_6 = arith.constant 0 : index
    %c0_7 = arith.constant 0 : index
    %c0_8 = arith.constant 0 : index
    %9 = vector.load %arg2[%c0_6, %c0_7, %c0_8] : memref<2x8x128xf32, #tpu.memory_space<vmem>>, vector<2x8x128xf32>
    %10 = vector.extract_strided_slice %8 {offsets = [0, 0, 0], sizes = [1, 8, 128], strides = [1, 1, 1]} : vector<2x8x128xf32> to vector<1x8x128xf32>
    %11 = vector.shape_cast %10 : vector<1x8x128xf32> to vector<8x128xf32>
    %12 = vector.extract_strided_slice %9 {offsets = [0, 0, 0], sizes = [1, 8, 128], strides = [1, 1, 1]} : vector<2x8x128xf32> to vector<1x8x128xf32>
    %13 = vector.shape_cast %12 : vector<1x8x128xf32> to vector<8x128xf32>
    %14 = tpu.concatenate %7, %11 in 1 : vector<8x128xf32>, vector<8x128xf32> -> vector<8x256xf32>
    %c0_9 = arith.constant 0 : index
    %c0_10 = arith.constant 0 : index
    %15 = vector.load %arg4[%c0_9, %c0_10] : memref<256x512xf32, #tpu.memory_space<vmem>>, vector<256x512xf32>
    %cst_11 = arith.constant dense<0.000000e+00> : vector<8x512xf32>
    %16 = tpu.matmul %14, %15, %cst_11 {dimension_numbers = #tpu.dot_dimension_numbers<[1], [0], [0], [1], [0, 0, 1, 1], [], []>} : vector<8x256xf32>, vector<256x512xf32>, vector<8x512xf32> -> vector<8x512xf32>
    %c0_12 = arith.constant 0 : index
    %c0_13 = arith.constant 0 : index
    %17 = vector.load %arg5[%c0_12, %c0_13] : memref<1x512xf32, #tpu.memory_space<vmem>>, vector<1x512xf32>
    %18 = vector.broadcast %17 : vector<1x512xf32> to vector<8x512xf32>
    %19 = arith.addf %16, %18 : vector<8x512xf32>
    %20 = vector.extract_strided_slice %19 {offsets = [0, 0], sizes = [8, 128], strides = [1, 1]} : vector<8x512xf32> to vector<8x128xf32>
    %21 = arith.negf %20 : vector<8x128xf32>
    %22 = math.exp %21 : vector<8x128xf32>
    %cst_14 = arith.constant 1.000000e+00 : f32
    %23 = vector.broadcast %cst_14 : f32 to vector<8x128xf32>
    %24 = arith.addf %23, %22 : vector<8x128xf32>
    %25 = arith.divf %23, %24 : vector<8x128xf32>
    %26 = vector.extract_strided_slice %19 {offsets = [0, 128], sizes = [8, 128], strides = [1, 1]} : vector<8x512xf32> to vector<8x128xf32>
    %27 = arith.negf %26 : vector<8x128xf32>
    %28 = math.exp %27 : vector<8x128xf32>
    %cst_15 = arith.constant 1.000000e+00 : f32
    %29 = vector.broadcast %cst_15 : f32 to vector<8x128xf32>
    %30 = arith.addf %29, %28 : vector<8x128xf32>
    %31 = arith.divf %29, %30 : vector<8x128xf32>
    %32 = vector.extract_strided_slice %19 {offsets = [0, 256], sizes = [8, 128], strides = [1, 1]} : vector<8x512xf32> to vector<8x128xf32>
    %33 = math.tanh %32 : vector<8x128xf32>
    %34 = vector.extract_strided_slice %19 {offsets = [0, 384], sizes = [8, 128], strides = [1, 1]} : vector<8x512xf32> to vector<8x128xf32>
    %35 = arith.negf %34 : vector<8x128xf32>
    %36 = math.exp %35 : vector<8x128xf32>
    %cst_16 = arith.constant 1.000000e+00 : f32
    %37 = vector.broadcast %cst_16 : f32 to vector<8x128xf32>
    %38 = arith.addf %37, %36 : vector<8x128xf32>
    %39 = arith.divf %37, %38 : vector<8x128xf32>
    %40 = arith.mulf %31, %13 : vector<8x128xf32>
    %41 = arith.mulf %25, %33 : vector<8x128xf32>
    %42 = arith.addf %40, %41 : vector<8x128xf32>
    %43 = math.tanh %42 : vector<8x128xf32>
    %44 = arith.mulf %39, %43 : vector<8x128xf32>
    %c0_17 = arith.constant 0 : index
    %c0_18 = arith.constant 0 : index
    %c0_19 = arith.constant 0 : index
    %45 = vector.load %arg11[%c0_17, %c0_18, %c0_19] : memref<2x8x128xf32, #tpu.memory_space<vmem>>, vector<1x8x128xf32>
    %46 = vector.shape_cast %45 : vector<1x8x128xf32> to vector<8x128xf32>
    %47 = vector.shape_cast %44 : vector<8x128xf32> to vector<1x8x128xf32>
    tpu.vector_store %arg11[%c0_17, %c0_18, %c0_19], %47 {strides = array<i32>} : memref<2x8x128xf32, #tpu.memory_space<vmem>>, vector<1x8x128xf32>,
    %c0_20 = arith.constant 0 : index
    %c0_21 = arith.constant 0 : index
    %c0_22 = arith.constant 0 : index
    %48 = vector.load %arg12[%c0_20, %c0_21, %c0_22] : memref<2x8x128xf32, #tpu.memory_space<vmem>>, vector<1x8x128xf32>
    %49 = vector.shape_cast %48 : vector<1x8x128xf32> to vector<8x128xf32>
    %50 = vector.shape_cast %42 : vector<8x128xf32> to vector<1x8x128xf32>
    tpu.vector_store %arg12[%c0_20, %c0_21, %c0_22], %50 {strides = array<i32>} : memref<2x8x128xf32, #tpu.memory_space<vmem>>, vector<1x8x128xf32>,
    %51 = vector.extract_strided_slice %8 {offsets = [1, 0, 0], sizes = [1, 8, 128], strides = [1, 1, 1]} : vector<2x8x128xf32> to vector<1x8x128xf32>
    %52 = vector.shape_cast %51 : vector<1x8x128xf32> to vector<8x128xf32>
    %53 = vector.extract_strided_slice %9 {offsets = [1, 0, 0], sizes = [1, 8, 128], strides = [1, 1, 1]} : vector<2x8x128xf32> to vector<1x8x128xf32>
    %54 = vector.shape_cast %53 : vector<1x8x128xf32> to vector<8x128xf32>
    %55 = tpu.concatenate %44, %52 in 1 : vector<8x128xf32>, vector<8x128xf32> -> vector<8x256xf32>
    %c0_23 = arith.constant 0 : index
    %c0_24 = arith.constant 0 : index
    %56 = vector.load %arg6[%c0_23, %c0_24] : memref<256x512xf32, #tpu.memory_space<vmem>>, vector<256x512xf32>
    %cst_25 = arith.constant dense<0.000000e+00> : vector<8x512xf32>
    %57 = tpu.matmul %55, %56, %cst_25 {dimension_numbers = #tpu.dot_dimension_numbers<[1], [0], [0], [1], [0, 0, 1, 1], [], []>} : vector<8x256xf32>, vector<256x512xf32>, vector<8x512xf32> -> vector<8x512xf32>
    %c0_26 = arith.constant 0 : index
    %c0_27 = arith.constant 0 : index
    %58 = vector.load %arg7[%c0_26, %c0_27] : memref<1x512xf32, #tpu.memory_space<vmem>>, vector<1x512xf32>
    %59 = vector.broadcast %58 : vector<1x512xf32> to vector<8x512xf32>
    %60 = arith.addf %57, %59 : vector<8x512xf32>
    %61 = vector.extract_strided_slice %60 {offsets = [0, 0], sizes = [8, 128], strides = [1, 1]} : vector<8x512xf32> to vector<8x128xf32>
    %62 = arith.negf %61 : vector<8x128xf32>
    %63 = math.exp %62 : vector<8x128xf32>
    %cst_28 = arith.constant 1.000000e+00 : f32
    %64 = vector.broadcast %cst_28 : f32 to vector<8x128xf32>
    %65 = arith.addf %64, %63 : vector<8x128xf32>
    %66 = arith.divf %64, %65 : vector<8x128xf32>
    %67 = vector.extract_strided_slice %60 {offsets = [0, 128], sizes = [8, 128], strides = [1, 1]} : vector<8x512xf32> to vector<8x128xf32>
    %68 = arith.negf %67 : vector<8x128xf32>
    %69 = math.exp %68 : vector<8x128xf32>
    %cst_29 = arith.constant 1.000000e+00 : f32
    %70 = vector.broadcast %cst_29 : f32 to vector<8x128xf32>
    %71 = arith.addf %70, %69 : vector<8x128xf32>
    %72 = arith.divf %70, %71 : vector<8x128xf32>
    %73 = vector.extract_strided_slice %60 {offsets = [0, 256], sizes = [8, 128], strides = [1, 1]} : vector<8x512xf32> to vector<8x128xf32>
    %74 = math.tanh %73 : vector<8x128xf32>
    %75 = vector.extract_strided_slice %60 {offsets = [0, 384], sizes = [8, 128], strides = [1, 1]} : vector<8x512xf32> to vector<8x128xf32>
    %76 = arith.negf %75 : vector<8x128xf32>
    %77 = math.exp %76 : vector<8x128xf32>
    %cst_30 = arith.constant 1.000000e+00 : f32
    %78 = vector.broadcast %cst_30 : f32 to vector<8x128xf32>
    %79 = arith.addf %78, %77 : vector<8x128xf32>
    %80 = arith.divf %78, %79 : vector<8x128xf32>
    %81 = arith.mulf %72, %54 : vector<8x128xf32>
    %82 = arith.mulf %66, %74 : vector<8x128xf32>
    %83 = arith.addf %81, %82 : vector<8x128xf32>
    %84 = math.tanh %83 : vector<8x128xf32>
    %85 = arith.mulf %80, %84 : vector<8x128xf32>
    %c1 = arith.constant 1 : index
    %c0_31 = arith.constant 0 : index
    %c0_32 = arith.constant 0 : index
    %86 = vector.load %arg11[%c1, %c0_31, %c0_32] : memref<2x8x128xf32, #tpu.memory_space<vmem>>, vector<1x8x128xf32>
    %87 = vector.shape_cast %86 : vector<1x8x128xf32> to vector<8x128xf32>
    %88 = vector.shape_cast %85 : vector<8x128xf32> to vector<1x8x128xf32>
    tpu.vector_store %arg11[%c1, %c0_31, %c0_32], %88 {strides = array<i32>} : memref<2x8x128xf32, #tpu.memory_space<vmem>>, vector<1x8x128xf32>,
    %c1_33 = arith.constant 1 : index
    %c0_34 = arith.constant 0 : index
    %c0_35 = arith.constant 0 : index
    %89 = vector.load %arg12[%c1_33, %c0_34, %c0_35] : memref<2x8x128xf32, #tpu.memory_space<vmem>>, vector<1x8x128xf32>
    %90 = vector.shape_cast %89 : vector<1x8x128xf32> to vector<8x128xf32>
    %91 = vector.shape_cast %83 : vector<8x128xf32> to vector<1x8x128xf32>
    tpu.vector_store %arg12[%c1_33, %c0_34, %c0_35], %91 {strides = array<i32>} : memref<2x8x128xf32, #tpu.memory_space<vmem>>, vector<1x8x128xf32>,
    %c0_36 = arith.constant 0 : index
    %c0_37 = arith.constant 0 : index
    %92 = vector.load %arg8[%c0_36, %c0_37] : memref<128x128xf32, #tpu.memory_space<vmem>>, vector<128x128xf32>
    %cst_38 = arith.constant dense<0.000000e+00> : vector<8x128xf32>
    %93 = tpu.matmul %85, %92, %cst_38 {dimension_numbers = #tpu.dot_dimension_numbers<[1], [0], [0], [1], [0, 0, 1, 1], [], []>} : vector<8x128xf32>, vector<128x128xf32>, vector<8x128xf32> -> vector<8x128xf32>
    %c0_39 = arith.constant 0 : index
    %c0_40 = arith.constant 0 : index
    %94 = vector.load %arg9[%c0_39, %c0_40] : memref<1x128xf32, #tpu.memory_space<vmem>>, vector<1x128xf32>
    %95 = vector.broadcast %94 : vector<1x128xf32> to vector<8x128xf32>
    %96 = arith.addf %93, %95 : vector<8x128xf32>
    %c0_41 = arith.constant 0 : index
    %c0_42 = arith.constant 0 : index
    %97 = vector.load %arg10[%c0_41, %c0_42] : memref<8x128xf32, #tpu.memory_space<vmem>>, vector<8x128xf32>
    tpu.vector_store %arg10[%c0_41, %c0_42], %96 {strides = array<i32>} : memref<8x128xf32, #tpu.memory_space<vmem>>, vector<8x128xf32>,
    return
  }
}

</mosaic_0001>

<llo_original>
// kernel: tpu_custom_call.1
$region0: #{tpu_custom_call.1}
  #allocation0 [shape = 'u32[]', space=smem, size = 0x4, offset = 0x4, fixed_abs, tag = 'smem constant byte address 0x4 - core index']
  #allocation1 [shape = 'u32[72,128]{1,0:T(1,128)}', space=vmem, size = 0x9000, scoped, tag = 'internal scratch']
  %s0 = inlined_call_operand.vmem [shape: s32[8,1], index: 0, kind: input, shape index: {}]
  %s1 = inlined_call_operand.hbm [shape: f32[2,8,128], index: 1, kind: input, shape index: {}, may-alias: {1,11}]
  %s2 = inlined_call_operand.hbm [shape: f32[2,8,128], index: 2, kind: input, shape index: {}, may-alias: {2,12}]
  %s3 = inlined_call_operand.hbm [shape: f32[64,128], index: 3, kind: input, shape index: {}]
  %s4 = inlined_call_operand.hbm [shape: f32[256,512], index: 4, kind: input, shape index: {}]
  %s5 = inlined_call_operand.vmem [shape: f32[1,512], index: 5, kind: input, shape index: {}]
  %s6 = inlined_call_operand.hbm [shape: f32[256,512], index: 6, kind: input, shape index: {}]
  %s7 = inlined_call_operand.vmem [shape: f32[1,512], index: 7, kind: input, shape index: {}]
  %s8 = inlined_call_operand.hbm [shape: f32[128,128], index: 8, kind: input, shape index: {}]
  %s9 = inlined_call_operand.vmem [shape: f32[1,128], index: 9, kind: input, shape index: {}]
  %s10 = inlined_call_operand.hbm [shape: f32[8,128], index: 10, kind: output, shape index: {0}]
  %s11 = inlined_call_operand.hbm [shape: f32[2,8,128], index: 11, kind: output, shape index: {1}, may-alias: {1,11}]
  %s12 = inlined_call_operand.hbm [shape: f32[2,8,128], index: 12, kind: output, shape index: {2}, may-alias: {2,12}]
  %13 = xla_tuple %s10, %s11, %s12
  %s14 = sld [smem:[#allocation0]]
  $region90: #{tpu_custom_call.1} parent=0
    _
  %s16 = ssub.s32 1, %s14
  %s17 = scalar_select 0, %s16, %s14
  $region1: #{tpu_custom_call.1} parent=0
    #allocation2 [shape = 'u8[8192]{0}', space=vmem, size = 0x2000, scoped, tag = 'input window, operand 1, single buffered']
    #allocation3 [shape = 's32[1]{0}', space=sflag, size = 0x4, scoped, tag = 'scoped memory for tpu_custom_call.1']
    #allocation4 [shape = 's32[1]{0}', space=sflag, size = 0x4, scoped, tag = 'scoped memory for tpu_custom_call.1']
    #allocation5 [shape = 'u8[8192]{0}', space=vmem, size = 0x2000, scoped, tag = 'input window, operand 2, single buffered']
    #allocation6 [shape = 's32[1]{0}', space=sflag, size = 0x4, scoped, tag = 'scoped memory for tpu_custom_call.1']
    #allocation7 [shape = 'u8[32768]{0}', space=vmem, size = 0x8000, scoped, tag = 'input window, operand 3, single buffered']
    #allocation8 [shape = 'u8[524288]{0}', space=vmem, size = 0x80000, scoped, tag = 'input window, operand 4, single buffered']
    #allocation9 [shape = 's32[1]{0}', space=sflag, size = 0x4, scoped, tag = 'scoped memory for tpu_custom_call.1']
    #allocation10 [shape = 'u8[524288]{0}', space=vmem, size = 0x80000, scoped, tag = 'input window, operand 6, single buffered']
    #allocation11 [shape = 'u8[65536]{0}', space=vmem, size = 0x10000, scoped, tag = 'input window, operand 8, single buffered']
    #allocation12 [shape = 's32[1]{0}', space=sflag, size = 0x4, scoped, tag = 'scoped memory for tpu_custom_call.1']
    #allocation13 [shape = 'u8[4096]{0}', space=vmem, size = 0x1000, scoped, tag = 'output window, operand 0, single buffered']
    #allocation14 [shape = 'u8[8192]{0}', space=vmem, size = 0x2000, scoped, tag = 'output window, operand 1, single buffered']
    #allocation15 [shape = 's32[1]{0}', space=sflag, size = 0x4, scoped, tag = 'scoped memory for tpu_custom_call.1']
    #allocation16 [shape = 'u8[8192]{0}', space=vmem, size = 0x2000, scoped, tag = 'output window, operand 2, single buffered']
    %18 = vsyncpa [#allocation3], 0
    %19 = vsyncpa [#allocation6], 0
    %20 = vsyncpa [#allocation9], 0
    %21 = vsyncpa [#allocation12], 0
    %22 = vsyncpa [#allocation4], 0
    %23 = vsyncpa [#allocation15], 0
    // Predicated region
    $region2: #{tpu_custom_call.1} parent=1 // pred_check
      _
    $region3: #{tpu_custom_call.1} parent=1 // pred_check_branch
      %25 = sbr.rel (0) target = $region5
    $region4: #{tpu_custom_call.1} parent=1 // pred_region
      _
    $region5: #{tpu_custom_call.1} parent=1 // pred_fallthru
      _
    // Predicated region
    $region6: #{tpu_custom_call.1} parent=1 // pred_check
      _
    $region7: #{tpu_custom_call.1} parent=1 // pred_check_branch
      %27 = sbr.rel (0) target = $region9
    $region8: #{tpu_custom_call.1} parent=1 // pred_region
      %29 = vsyncadd [#allocation3], 0
      %s30 = sshll.u32 %s1, 4
      %s31 = int_to_ptr.hbm [resolvable:$true] %s30
      %s32 = sshll.u32 [#allocation2], 4
      %s33 = int_to_ptr.vmem [resolvable:$true] %s32
      %38 = dma.hbm_to_vmem [thread:$0]  %s31, 256, %s33, [#allocation3], 128, 128, 8
    $region9: #{tpu_custom_call.1} parent=1 // pred_fallthru
      _
    // Predicated region
    $region10: #{tpu_custom_call.1} parent=1 // pred_check
      _
    $region11: #{tpu_custom_call.1} parent=1 // pred_check_branch
      %40 = sbr.rel (0) target = $region13
    $region12: #{tpu_custom_call.1} parent=1 // pred_region
      %42 = vsyncadd [#allocation6], 0
      %s43 = sshll.u32 %s2, 4
      %s44 = int_to_ptr.hbm [resolvable:$true] %s43
      %s45 = sshll.u32 [#allocation5], 4
      %s46 = int_to_ptr.vmem [resolvable:$true] %s45
      %51 = dma.hbm_to_vmem [thread:$0]  %s44, 256, %s46, [#allocation6], 128, 128, 8
    $region13: #{tpu_custom_call.1} parent=1 // pred_fallthru
      _
    // Predicated region
    $region14: #{tpu_custom_call.1} parent=1 // pred_check
      _
    $region15: #{tpu_custom_call.1} parent=1 // pred_check_branch
      %53 = sbr.rel (0) target = $region17
    $region16: #{tpu_custom_call.1} parent=1 // pred_region
      %55 = vsyncadd [#allocation6], 0
      %s56 = sshll.u32 %s3, 4
      %s57 = int_to_ptr.hbm [resolvable:$true] %s56
      %s58 = sshll.u32 [#allocation7], 4
      %s59 = int_to_ptr.vmem [resolvable:$true] %s58
      %64 = dma.hbm_to_vmem [thread:$0]  %s57, 1024, %s59, [#allocation6], 128, 128, 8
    $region17: #{tpu_custom_call.1} parent=1 // pred_fallthru
      _
    // Predicated region
    $region18: #{tpu_custom_call.1} parent=1 // pred_check
      _
    $region19: #{tpu_custom_call.1} parent=1 // pred_check_branch
      %66 = sbr.rel (0) target = $region21
    $region20: #{tpu_custom_call.1} parent=1 // pred_region
      %68 = vsyncadd [#allocation9], 0
      %s69 = sshll.u32 %s4, 4
      %s70 = int_to_ptr.hbm [resolvable:$true] %s69
      %s71 = sshll.u32 [#allocation8], 4
      %s72 = int_to_ptr.vmem [resolvable:$true] %s71
      %77 = dma.hbm_to_vmem [thread:$0]  %s70, 16384, %s72, [#allocation9], 512, 512, 32
    $region21: #{tpu_custom_call.1} parent=1 // pred_fallthru
      _
    // Predicated region
    $region22: #{tpu_custom_call.1} parent=1 // pred_check
      _
    $region23: #{tpu_custom_call.1} parent=1 // pred_check_branch
      %79 = sbr.rel (0) target = $region25
    $region24: #{tpu_custom_call.1} parent=1 // pred_region
      _
    $region25: #{tpu_custom_call.1} parent=1 // pred_fallthru
      _
    // Predicated region
    $region26: #{tpu_custom_call.1} parent=1 // pred_check
      _
    $region27: #{tpu_custom_call.1} parent=1 // pred_check_branch
      %81 = sbr.rel (0) target = $region29
    $region28: #{tpu_custom_call.1} parent=1 // pred_region
      %83 = vsyncadd [#allocation9], 0
      %s84 = sshll.u32 %s6, 4
      %s85 = int_to_ptr.hbm [resolvable:$true] %s84
      %s86 = sshll.u32 [#allocation10], 4
      %s87 = int_to_ptr.vmem [resolvable:$true] %s86
      %92 = dma.hbm_to_vmem [thread:$0]  %s85, 16384, %s87, [#allocation9], 512, 512, 32
    $region29: #{tpu_custom_call.1} parent=1 // pred_fallthru
      _
    // Predicated region
    $region30: #{tpu_custom_call.1} parent=1 // pred_check
      _
    $region31: #{tpu_custom_call.1} parent=1 // pred_check_branch
      %94 = sbr.rel (0) target = $region33
    $region32: #{tpu_custom_call.1} parent=1 // pred_region
      _
    $region33: #{tpu_custom_call.1} parent=1 // pred_fallthru
      _
    // Predicated region
    $region34: #{tpu_custom_call.1} parent=1 // pred_check
      _
    $region35: #{tpu_custom_call.1} parent=1 // pred_check_branch
      %96 = sbr.rel (0) target = $region37
    $region36: #{tpu_custom_call.1} parent=1 // pred_region
      %98 = vsyncadd [#allocation12], 0
      %s99 = sshll.u32 %s8, 4
      %s100 = int_to_ptr.hbm [resolvable:$true] %s99
      %s101 = sshll.u32 [#allocation11], 4
      %s102 = int_to_ptr.vmem [resolvable:$true] %s101
      %107 = dma.hbm_to_vmem [thread:$0]  %s100, 2048, %s102, [#allocation12], 128, 128, 8
    $region37: #{tpu_custom_call.1} parent=1 // pred_fallthru
      _
    // Predicated region
    $region38: #{tpu_custom_call.1} parent=1 // pred_check
      _
    $region39: #{tpu_custom_call.1} parent=1 // pred_check_branch
      %109 = sbr.rel (0) target = $region41
    $region40: #{tpu_custom_call.1} parent=1 // pred_region
      _
    $region41: #{tpu_custom_call.1} parent=1 // pred_fallthru
      _
    // Predicated region
    $region42: #{tpu_custom_call.1} parent=1 // pred_check
      _
    $region43: #{tpu_custom_call.1} parent=1 // pred_check_branch
      %111 = sbr.rel (0) target = $region45
    $region44: #{tpu_custom_call.1} parent=1 // pred_region
      %113 = dma.done [#allocation3], 256
    $region45: #{tpu_custom_call.1} parent=1 // pred_fallthru
      _
    // Predicated region
    $region46: #{tpu_custom_call.1} parent=1 // pred_check
      _
    $region47: #{tpu_custom_call.1} parent=1 // pred_check_branch
      %115 = sbr.rel (0) target = $region49
    $region48: #{tpu_custom_call.1} parent=1 // pred_region
      %117 = dma.done [#allocation6], 256
    $region49: #{tpu_custom_call.1} parent=1 // pred_fallthru
      _
    // Predicated region
    $region50: #{tpu_custom_call.1} parent=1 // pred_check
      _
    $region51: #{tpu_custom_call.1} parent=1 // pred_check_branch
      %119 = sbr.rel (0) target = $region53
    $region52: #{tpu_custom_call.1} parent=1 // pred_region
      %121 = dma.done [#allocation6], 1024
    $region53: #{tpu_custom_call.1} parent=1 // pred_fallthru
      _
    // Predicated region
    $region54: #{tpu_custom_call.1} parent=1 // pred_check
      _
    $region55: #{tpu_custom_call.1} parent=1 // pred_check_branch
      %123 = sbr.rel (0) target = $region57
    $region56: #{tpu_custom_call.1} parent=1 // pred_region
      %125 = dma.done [#allocation9], 16384
    $region57: #{tpu_custom_call.1} parent=1 // pred_fallthru
      _
    // Predicated region
    $region58: #{tpu_custom_call.1} parent=1 // pred_check
      _
    $region59: #{tpu_custom_call.1} parent=1 // pred_check_branch
      %127 = sbr.rel (0) target = $region61
    $region60: #{tpu_custom_call.1} parent=1 // pred_region
      %129 = dma.done [#allocation9], 16384
    $region61: #{tpu_custom_call.1} parent=1 // pred_fallthru
      _
    // Predicated region
    $region62: #{tpu_custom_call.1} parent=1 // pred_check
      _
    $region63: #{tpu_custom_call.1} parent=1 // pred_check_branch
      %131 = sbr.rel (0) target = $region65
    $region64: #{tpu_custom_call.1} parent=1 // pred_region
      %133 = dma.done [#allocation12], 2048
    $region65: #{tpu_custom_call.1} parent=1 // pred_fallthru
      _
    %v134 = vld [vmem:[%s0] sm:$0xff]
    %v135 = vlaneseq
    %v136 = vand.u32 %v135, 127
    %137 = vset.pattern.permute.xlu0 0
    %138 = vperm.xlu0 %137, %v134
    %v139 = vpop.permute.xlu0 %138
    %vm140 = vcmp.eq.s32.totalorder %v139, %v136
    %v141 = vsel %vm140, 1, 0
    %v142 = vcvt.s32.f32 %v141
    %v143 = vld [vmem:[#allocation7] sm:$0xff]
    %v144 = vld [vmem:[#allocation7 + $0x8] sm:$0xff]
    %v145 = vld [vmem:[#allocation7 + $0x10] sm:$0xff]
    %v146 = vld [vmem:[#allocation7 + $0x18] sm:$0xff]
    %v147 = vld [vmem:[#allocation7 + $0x20] sm:$0xff]
    %v148 = vld [vmem:[#allocation7 + $0x28] sm:$0xff]
    %v149 = vld [vmem:[#allocation7 + $0x30] sm:$0xff]
    %v150 = vld [vmem:[#allocation7 + $0x38] sm:$0xff]
    %vm151 = vcmask 523264
    %v153 = vsel %vm151, %v142, 0
    %155 = vmatpush.msra.mxu0 0.0
    %156 = vmatpush.msra.mxu0 0.0
    %157 = vmatpush.msra.mxu0 0.0
    %158 = vmatpush.msra.mxu0 0.0
    %159 = vmatpush.msra.mxu0 0.0
    %160 = vmatpush.msra.mxu0 0.0
    %161 = vmatpush.msra.mxu0 0.0
    %162 = vmatpush.msra.mxu0 0.0
    %163 = vmatpush.msra.mxu0 %v150
    %164 = vmatpush.msra.mxu0 %v149
    %165 = vmatpush.msra.mxu0 %v148
    %166 = vmatpush.msra.mxu0 %v147
    %167 = vmatpush.msra.mxu0 %v146
    %168 = vmatpush.msra.mxu0 %v145
    %169 = vmatpush.msra.mxu0 %v144
    %170 = vmatpush.msra.mxu0 %v143
    %171 = vmatmul.f32.gmra.mxu0 %v153
    %v172 = vpop.f32.mrf.mxu0
    %v173 = vadd.f32 0.0, %v172
    %174 = vdwg.mxu0
    %v175 = vld [vmem:[#allocation2] sm:$0xff]
    %v176 = vld [vmem:[#allocation2 + $0x8] sm:$0xff]
    %v177 = vld [vmem:[#allocation5] sm:$0xff]
    %v178 = vld [vmem:[#allocation5 + $0x8] sm:$0xff]
    %v179 = vld [vmem:[#allocation8] sm:$0xff]
    %v180 = vld [vmem:[#allocation8 + $0x8] sm:$0xff]
    %v181 = vld [vmem:[#allocation8 + $0x10] sm:$0xff]
    %v182 = vld [vmem:[#allocation8 + $0x18] sm:$0xff]
    %v183 = vld [vmem:[#allocation8 + $0x20] sm:$0xff]
    %v184 = vld [vmem:[#allocation8 + $0x28] sm:$0xff]
    %v185 = vld [vmem:[#allocation8 + $0x30] sm:$0xff]
    %v186 = vld [vmem:[#allocation8 + $0x38] sm:$0xff]
    %v187 = vld [vmem:[#allocation8 + $0x40] sm:$0xff]
    %v188 = vld [vmem:[#allocation8 + $0x48] sm:$0xff]
    %v189 = vld [vmem:[#allocation8 + $0x50] sm:$0xff]
    %v190 = vld [vmem:[#allocation8 + $0x58] sm:$0xff]
    %v191 = vld [vmem:[#allocation8 + $0x60] sm:$0xff]
    %v192 = vld [vmem:[#allocation8 + $0x68] sm:$0xff]
    %v193 = vld [vmem:[#allocation8 + $0x70] sm:$0xff]
    %v194 = vld [vmem:[#allocation8 + $0x78] sm:$0xff]
    %v195 = vld [vmem:[#allocation8 + $0x80] sm:$0xff]
    %v196 = vld [vmem:[#allocation8 + $0x88] sm:$0xff]
    %v197 = vld [vmem:[#allocation8 + $0x90] sm:$0xff]
    %v198 = vld [vmem:[#allocation8 + $0x98] sm:$0xff]
    %v199 = vld [vmem:[#allocation8 + $0xa0] sm:$0xff]
    %v200 = vld [vmem:[#allocation8 + $0xa8] sm:$0xff]
    %v201 = vld [vmem:[#allocation8 + $0xb0] sm:$0xff]
    %v202 = vld [vmem:[#allocation8 + $0xb8] sm:$0xff]
    %v203 = vld [vmem:[#allocation8 + $0xc0] sm:$0xff]
    %v204 = vld [vmem:[#allocation8 + $0xc8] sm:$0xff]
    %v205 = vld [vmem:[#allocation8 + $0xd0] sm:$0xff]
    %v206 = vld [vmem:[#allocation8 + $0xd8] sm:$0xff]
    %v207 = vld [vmem:[#allocation8 + $0xe0] sm:$0xff]
    %v208 = vld [vmem:[#allocation8 + $0xe8] sm:$0xff]
    %v209 = vld [vmem:[#allocation8 + $0xf0] sm:$0xff]
    %v210 = vld [vmem:[#allocation8 + $0xf8] sm:$0xff]
    %v211 = vld [vmem:[#allocation8 + $0x100] sm:$0xff]
    %v212 = vld [vmem:[#allocation8 + $0x108] sm:$0xff]
    %v213 = vld [vmem:[#allocation8 + $0x110] sm:$0xff]
    %v214 = vld [vmem:[#allocation8 + $0x118] sm:$0xff]
    %v215 = vld [vmem:[#allocation8 + $0x120] sm:$0xff]
    %v216 = vld [vmem:[#allocation8 + $0x128] sm:$0xff]
    %v217 = vld [vmem:[#allocation8 + $0x130] sm:$0xff]
    %v218 = vld [vmem:[#allocation8 + $0x138] sm:$0xff]
    %v219 = vld [vmem:[#allocation8 + $0x140] sm:$0xff]
    %v220 = vld [vmem:[#allocation8 + $0x148] sm:$0xff]
    %v221 = vld [vmem:[#allocation8 + $0x150] sm:$0xff]
    %v222 = vld [vmem:[#allocation8 + $0x158] sm:$0xff]
    %v223 = vld [vmem:[#allocation8 + $0x160] sm:$0xff]
    %v224 = vld [vmem:[#allocation8 + $0x168] sm:$0xff]
    %v225 = vld [vmem:[#allocation8 + $0x170] sm:$0xff]
    %v226 = vld [vmem:[#allocation8 + $0x178] sm:$0xff]
    %v227 = vld [vmem:[#allocation8 + $0x180] sm:$0xff]
    %v228 = vld [vmem:[#allocation8 + $0x188] sm:$0xff]
    %v229 = vld [vmem:[#allocation8 + $0x190] sm:$0xff]
    %v230 = vld [vmem:[#allocation8 + $0x198] sm:$0xff]
    %v231 = vld [vmem:[#allocation8 + $0x1a0] sm:$0xff]
    %v232 = vld [vmem:[#allocation8 + $0x1a8] sm:$0xff]
    %v233 = vld [vmem:[#allocation8 + $0x1b0] sm:$0xff]
    %v234 = vld [vmem:[#allocation8 + $0x1b8] sm:$0xff]
    %v235 = vld [vmem:[#allocation8 + $0x1c0] sm:$0xff]
    %v236 = vld [vmem:[#allocation8 + $0x1c8] sm:$0xff]
    %v237 = vld [vmem:[#allocation8 + $0x1d0] sm:$0xff]
    %v238 = vld [vmem:[#allocation8 + $0x1d8] sm:$0xff]
    %v239 = vld [vmem:[#allocation8 + $0x1e0] sm:$0xff]
    %v240 = vld [vmem:[#allocation8 + $0x1e8] sm:$0xff]
    %v241 = vld [vmem:[#allocation8 + $0x1f0] sm:$0xff]
    %v242 = vld [vmem:[#allocation8 + $0x1f8] sm:$0xff]
    %v243 = vld [vmem:[#allocation8 + $0x200] sm:$0xff]
    %v244 = vld [vmem:[#allocation8 + $0x208] sm:$0xff]
    %v245 = vld [vmem:[#allocation8 + $0x210] sm:$0xff]
    %v246 = vld [vmem:[#allocation8 + $0x218] sm:$0xff]
    %v247 = vld [vmem:[#allocation8 + $0x220] sm:$0xff]
    %v248 = vld [vmem:[#allocation8 + $0x228] sm:$0xff]
    %v249 = vld [vmem:[#allocation8 + $0x230] sm:$0xff]
    %v250 = vld [vmem:[#allocation8 + $0x238] sm:$0xff]
    %v251 = vld [vmem:[#allocation8 + $0x240] sm:$0xff]
    %v252 = vld [vmem:[#allocation8 + $0x248] sm:$0xff]
    %v253 = vld [vmem:[#allocation8 + $0x250] sm:$0xff]
    %v254 = vld [vmem:[#allocation8 + $0x258] sm:$0xff]
    %v255 = vld [vmem:[#allocation8 + $0x260] sm:$0xff]
    %v256 = vld [vmem:[#allocation8 + $0x268] sm:$0xff]
    %v257 = vld [vmem:[#allocation8 + $0x270] sm:$0xff]
    %v258 = vld [vmem:[#allocation8 + $0x278] sm:$0xff]
    %v259 = vld [vmem:[#allocation8 + $0x280] sm:$0xff]
    %v260 = vld [vmem:[#allocation8 + $0x288] sm:$0xff]
    %v261 = vld [vmem:[#allocation8 + $0x290] sm:$0xff]
    %v262 = vld [vmem:[#allocation8 + $0x298] sm:$0xff]
    %v263 = vld [vmem:[#allocation8 + $0x2a0] sm:$0xff]
    %v264 = vld [vmem:[#allocation8 + $0x2a8] sm:$0xff]
    %v265 = vld [vmem:[#allocation8 + $0x2b0] sm:$0xff]
    %v266 = vld [vmem:[#allocation8 + $0x2b8] sm:$0xff]
    %v267 = vld [vmem:[#allocation8 + $0x2c0] sm:$0xff]
    %v268 = vld [vmem:[#allocation8 + $0x2c8] sm:$0xff]
    %v269 = vld [vmem:[#allocation8 + $0x2d0] sm:$0xff]
    %v270 = vld [vmem:[#allocation8 + $0x2d8] sm:$0xff]
    %v271 = vld [vmem:[#allocation8 + $0x2e0] sm:$0xff]
    %v272 = vld [vmem:[#allocation8 + $0x2e8] sm:$0xff]
    %v273 = vld [vmem:[#allocation8 + $0x2f0] sm:$0xff]
    %v274 = vld [vmem:[#allocation8 + $0x2f8] sm:$0xff]
    %v275 = vld [vmem:[#allocation8 + $0x300] sm:$0xff]
    %v276 = vld [vmem:[#allocation8 + $0x308] sm:$0xff]
    %v277 = vld [vmem:[#allocation8 + $0x310] sm:$0xff]
    %v278 = vld [vmem:[#allocation8 + $0x318] sm:$0xff]
    %v279 = vld [vmem:[#allocation8 + $0x320] sm:$0xff]
    %v280 = vld [vmem:[#allocation8 + $0x328] sm:$0xff]
    %v281 = vld [vmem:[#allocation8 + $0x330] sm:$0xff]
    %v282 = vld [vmem:[#allocation8 + $0x338] sm:$0xff]
    %v283 = vld [vmem:[#allocation8 + $0x340] sm:$0xff]
    %v284 = vld [vmem:[#allocation8 + $0x348] sm:$0xff]
    %v285 = vld [vmem:[#allocation8 + $0x350] sm:$0xff]
    %v286 = vld [vmem:[#allocation8 + $0x358] sm:$0xff]
    %v287 = vld [vmem:[#allocation8 + $0x360] sm:$0xff]
    %v288 = vld [vmem:[#allocation8 + $0x368] sm:$0xff]
    %v289 = vld [vmem:[#allocation8 + $0x370] sm:$0xff]
    %v290 = vld [vmem:[#allocation8 + $0x378] sm:$0xff]
    %v291 = vld [vmem:[#allocation8 + $0x380] sm:$0xff]
    %v292 = vld [vmem:[#allocation8 + $0x388] sm:$0xff]
    %v293 = vld [vmem:[#allocation8 + $0x390] sm:$0xff]
    %v294 = vld [vmem:[#allocation8 + $0x398] sm:$0xff]
    %v295 = vld [vmem:[#allocation8 + $0x3a0] sm:$0xff]
    %v296 = vld [vmem:[#allocation8 + $0x3a8] sm:$0xff]
    %v297 = vld [vmem:[#allocation8 + $0x3b0] sm:$0xff]
    %v298 = vld [vmem:[#allocation8 + $0x3b8] sm:$0xff]
    %v299 = vld [vmem:[#allocation8 + $0x3c0] sm:$0xff]
    %v300 = vld [vmem:[#allocation8 + $0x3c8] sm:$0xff]
    %v301 = vld [vmem:[#allocation8 + $0x3d0] sm:$0xff]
    %v302 = vld [vmem:[#allocation8 + $0x3d8] sm:$0xff]
    %v303 = vld [vmem:[#allocation8 + $0x3e0] sm:$0xff]
    %v304 = vld [vmem:[#allocation8 + $0x3e8] sm:$0xff]
    %v305 = vld [vmem:[#allocation8 + $0x3f0] sm:$0xff]
    %v306 = vld [vmem:[#allocation8 + $0x3f8] sm:$0xff]
    %v307 = vld [vmem:[%s5] sm:$0xf]
    %v309 = vperm.slane %v307, 0
    %v310 = vperm.slane %v307, 1
    %v311 = vperm.slane %v307, 2
    %v312 = vperm.slane %v307, 3
    %317 = vmatpush.msra.mxu0 %v239
    %318 = vmatpush.msra.mxu0 %v235
    %319 = vmatpush.msra.mxu0 %v231
    %320 = vmatpush.msra.mxu0 %v227
    %321 = vmatpush.msra.mxu0 %v223
    %322 = vmatpush.msra.mxu0 %v219
    %323 = vmatpush.msra.mxu0 %v215
    %324 = vmatpush.msra.mxu0 %v211
    %325 = vmatpush.msra.mxu0 %v207
    %326 = vmatpush.msra.mxu0 %v203
    %327 = vmatpush.msra.mxu0 %v199
    %328 = vmatpush.msra.mxu0 %v195
    %329 = vmatpush.msra.mxu0 %v191
    %330 = vmatpush.msra.mxu0 %v187
    %331 = vmatpush.msra.mxu0 %v183
    %332 = vmatpush.msra.mxu0 %v179
    %333 = vmatmul.f32.gmra.mxu0 %v173
    %v334 = vpop.f32.mrf.mxu0
    %v335 = vadd.f32 %v309, %v334
    %336 = vdwg.mxu0
    %337 = vmatpush.msra.mxu0 %v303
    %338 = vmatpush.msra.mxu0 %v299
    %339 = vmatpush.msra.mxu0 %v295
    %340 = vmatpush.msra.mxu0 %v291
    %341 = vmatpush.msra.mxu0 %v287
    %342 = vmatpush.msra.mxu0 %v283
    %343 = vmatpush.msra.mxu0 %v279
    %344 = vmatpush.msra.mxu0 %v275
    %345 = vmatpush.msra.mxu0 %v271
    %346 = vmatpush.msra.mxu0 %v267
    %347 = vmatpush.msra.mxu0 %v263
    %348 = vmatpush.msra.mxu0 %v259
    %349 = vmatpush.msra.mxu0 %v255
    %350 = vmatpush.msra.mxu0 %v251
    %351 = vmatpush.msra.mxu0 %v247
    %352 = vmatpush.msra.mxu0 %v243
    %353 = vmatmul.f32.gmra.mxu0 %v175
    %v354 = vpop.f32.mrf.mxu0
    %v355 = vadd.f32 %v335, %v354
    %356 = vdwg.mxu0
    %357 = vmatpush.msra.mxu0 %v240
    %358 = vmatpush.msra.mxu0 %v236
    %359 = vmatpush.msra.mxu0 %v232
    %360 = vmatpush.msra.mxu0 %v228
    %361 = vmatpush.msra.mxu0 %v224
    %362 = vmatpush.msra.mxu0 %v220
    %363 = vmatpush.msra.mxu0 %v216
    %364 = vmatpush.msra.mxu0 %v212
    %365 = vmatpush.msra.mxu0 %v208
    %366 = vmatpush.msra.mxu0 %v204
    %367 = vmatpush.msra.mxu0 %v200
    %368 = vmatpush.msra.mxu0 %v196
    %369 = vmatpush.msra.mxu0 %v192
    %370 = vmatpush.msra.mxu0 %v188
    %371 = vmatpush.msra.mxu0 %v184
    %372 = vmatpush.msra.mxu0 %v180
    %373 = vmatmul.f32.gmra.mxu0 %v173
    %v374 = vpop.f32.mrf.mxu0
    %v375 = vadd.f32 %v310, %v374
    %376 = vdwg.mxu0
    %377 = vmatpush.msra.mxu0 %v304
    %378 = vmatpush.msra.mxu0 %v300
    %379 = vmatpush.msra.mxu0 %v296
    %380 = vmatpush.msra.mxu0 %v292
    %381 = vmatpush.msra.mxu0 %v288
    %382 = vmatpush.msra.mxu0 %v284
    %383 = vmatpush.msra.mxu0 %v280
    %384 = vmatpush.msra.mxu0 %v276
    %385 = vmatpush.msra.mxu0 %v272
    %386 = vmatpush.msra.mxu0 %v268
    %387 = vmatpush.msra.mxu0 %v264
    %388 = vmatpush.msra.mxu0 %v260
    %389 = vmatpush.msra.mxu0 %v256
    %390 = vmatpush.msra.mxu0 %v252
    %391 = vmatpush.msra.mxu0 %v248
    %392 = vmatpush.msra.mxu0 %v244
    %393 = vmatmul.f32.gmra.mxu0 %v175
    %v394 = vpop.f32.mrf.mxu0
    %v395 = vadd.f32 %v375, %v394
    %396 = vdwg.mxu0
    %397 = vmatpush.msra.mxu0 %v241
    %398 = vmatpush.msra.mxu0 %v237
    %399 = vmatpush.msra.mxu0 %v233
    %400 = vmatpush.msra.mxu0 %v229
    %401 = vmatpush.msra.mxu0 %v225
    %402 = vmatpush.msra.mxu0 %v221
    %403 = vmatpush.msra.mxu0 %v217
    %404 = vmatpush.msra.mxu0 %v213
    %405 = vmatpush.msra.mxu0 %v209
    %406 = vmatpush.msra.mxu0 %v205
    %407 = vmatpush.msra.mxu0 %v201
    %408 = vmatpush.msra.mxu0 %v197
    %409 = vmatpush.msra.mxu0 %v193
    %410 = vmatpush.msra.mxu0 %v189
    %411 = vmatpush.msra.mxu0 %v185
    %412 = vmatpush.msra.mxu0 %v181
    %413 = vmatmul.f32.gmra.mxu0 %v173
    %v414 = vpop.f32.mrf.mxu0
    %v415 = vadd.f32 %v311, %v414
    %416 = vdwg.mxu0
    %417 = vmatpush.msra.mxu0 %v305
    %418 = vmatpush.msra.mxu0 %v301
    %419 = vmatpush.msra.mxu0 %v297
    %420 = vmatpush.msra.mxu0 %v293
    %421 = vmatpush.msra.mxu0 %v289
    %422 = vmatpush.msra.mxu0 %v285
    %423 = vmatpush.msra.mxu0 %v281
    %424 = vmatpush.msra.mxu0 %v277
    %425 = vmatpush.msra.mxu0 %v273
    %426 = vmatpush.msra.mxu0 %v269
    %427 = vmatpush.msra.mxu0 %v265
    %428 = vmatpush.msra.mxu0 %v261
    %429 = vmatpush.msra.mxu0 %v257
    %430 = vmatpush.msra.mxu0 %v253
    %431 = vmatpush.msra.mxu0 %v249
    %432 = vmatpush.msra.mxu0 %v245
    %433 = vmatmul.f32.gmra.mxu0 %v175
    %v434 = vpop.f32.mrf.mxu0
    %v435 = vadd.f32 %v415, %v434
    %436 = vdwg.mxu0
    %437 = vmatpush.msra.mxu0 %v242
    %438 = vmatpush.msra.mxu0 %v238
    %439 = vmatpush.msra.mxu0 %v234
    %440 = vmatpush.msra.mxu0 %v230
    %441 = vmatpush.msra.mxu0 %v226
    %442 = vmatpush.msra.mxu0 %v222
    %443 = vmatpush.msra.mxu0 %v218
    %444 = vmatpush.msra.mxu0 %v214
    %445 = vmatpush.msra.mxu0 %v210
    %446 = vmatpush.msra.mxu0 %v206
    %447 = vmatpush.msra.mxu0 %v202
    %448 = vmatpush.msra.mxu0 %v198
    %449 = vmatpush.msra.mxu0 %v194
    %450 = vmatpush.msra.mxu0 %v190
    %451 = vmatpush.msra.mxu0 %v186
    %452 = vmatpush.msra.mxu0 %v182
    %453 = vmatmul.f32.gmra.mxu0 %v173
    %v454 = vpop.f32.mrf.mxu0
    %v455 = vadd.f32 %v312, %v454
    %456 = vdwg.mxu0
    %457 = vmatpush.msra.mxu0 %v306
    %458 = vmatpush.msra.mxu0 %v302
    %459 = vmatpush.msra.mxu0 %v298
    %460 = vmatpush.msra.mxu0 %v294
    %461 = vmatpush.msra.mxu0 %v290
    %462 = vmatpush.msra.mxu0 %v286
    %463 = vmatpush.msra.mxu0 %v282
    %464 = vmatpush.msra.mxu0 %v278
    %465 = vmatpush.msra.mxu0 %v274
    %466 = vmatpush.msra.mxu0 %v270
    %467 = vmatpush.msra.mxu0 %v266
    %468 = vmatpush.msra.mxu0 %v262
    %469 = vmatpush.msra.mxu0 %v258
    %470 = vmatpush.msra.mxu0 %v254
    %471 = vmatpush.msra.mxu0 %v250
    %472 = vmatpush.msra.mxu0 %v246
    %473 = vmatmul.f32.gmra.mxu0 %v175
    %v474 = vpop.f32.mrf.mxu0
    %v475 = vadd.f32 %v455, %v474
    %476 = vdwg.mxu0
    %v477 = vxor.u32 %v355, 2147483648
    %v478 = vmul.f32 %v477, 1.442695
    %v479 = vpow.pop %v478
    %v480 = vadd.f32 %v479, 1.0
    %v481 = vrcp.pop %v480
    %v482 = vmul.f32 %v480, %v481
    %v483 = vsub.f32 1.0, %v482
    %v484 = vmul.f32 %v481, %v483
    %v485 = vadd.f32 %v481, %v484
    %vm486 = vweird.f32 %v480
    %vm487 = vweird.f32 %v481
    %vm488 = vmor %vm486, %vm487
    %v489 = vsel %vm488, %v481, %v485
    %v490 = vand.u32 2147483647, %v480
    %vm491 = vcmp.eq.f32.partialorder %v490, 8.507059e+37
    %v492 = vand.u32 %v480, 2147483648
    %v493 = vor.u32 1.1754944e-38, %v492
    %v494 = vsel %vm491, %v493, %v489
    %v495 = vmul.f32 1.0, %v494
    %v496 = vxor.u32 %v395, 2147483648
    %v497 = vmul.f32 %v496, 1.442695
    %v498 = vpow.pop %v497
    %v499 = vadd.f32 %v498, 1.0
    %v500 = vrcp.pop %v499
    %v501 = vmul.f32 %v499, %v500
    %v502 = vsub.f32 1.0, %v501
    %v503 = vmul.f32 %v500, %v502
    %v504 = vadd.f32 %v500, %v503
    %vm505 = vweird.f32 %v499
    %vm506 = vweird.f32 %v500
    %vm507 = vmor %vm505, %vm506
    %v508 = vsel %vm507, %v500, %v504
    %v509 = vand.u32 2147483647, %v499
    %vm510 = vcmp.eq.f32.partialorder %v509, 8.507059e+37
    %v511 = vand.u32 %v499, 2147483648
    %v512 = vor.u32 1.1754944e-38, %v511
    %v513 = vsel %vm510, %v512, %v508
    %v514 = vmul.f32 1.0, %v513
    %v515 = vtanh.pop %v435
    %v516 = vxor.u32 %v475, 2147483648
    %v517 = vmul.f32 %v516, 1.442695
    %v518 = vpow.pop %v517
    %v519 = vadd.f32 %v518, 1.0
    %v520 = vrcp.pop %v519
    %v521 = vmul.f32 %v519, %v520
    %v522 = vsub.f32 1.0, %v521
    %v523 = vmul.f32 %v520, %v522
    %v524 = vadd.f32 %v520, %v523
    %vm525 = vweird.f32 %v519
    %vm526 = vweird.f32 %v520
    %vm527 = vmor %vm525, %vm526
    %v528 = vsel %vm527, %v520, %v524
    %v529 = vand.u32 2147483647, %v519
    %vm530 = vcmp.eq.f32.partialorder %v529, 8.507059e+37
    %v531 = vand.u32 %v519, 2147483648
    %v532 = vor.u32 1.1754944e-38, %v531
    %v533 = vsel %vm530, %v532, %v528
    %v534 = vmul.f32 1.0, %v533
    %v535 = vmul.f32 %v514, %v177
    %v536 = vmul.f32 %v495, %v515
    %v537 = vadd.f32 %v535, %v536
    %v538 = vtanh.pop %v537
    %v539 = vmul.f32 %v534, %v538
    %540 = vst [vmem:[#allocation14] sm:$0xff] %v539
    %541 = vst [vmem:[#allocation16] sm:$0xff] %v537
    %v542 = vld [vmem:[#allocation10] sm:$0xff]
    %v543 = vld [vmem:[#allocation10 + $0x8] sm:$0xff]
    %v544 = vld [vmem:[#allocation10 + $0x10] sm:$0xff]
    %v545 = vld [vmem:[#allocation10 + $0x18] sm:$0xff]
    %v546 = vld [vmem:[#allocation10 + $0x20] sm:$0xff]
    %v547 = vld [vmem:[#allocation10 + $0x28] sm:$0xff]
    %v548 = vld [vmem:[#allocation10 + $0x30] sm:$0xff]
    %v549 = vld [vmem:[#allocation10 + $0x38] sm:$0xff]
    %v550 = vld [vmem:[#allocation10 + $0x40] sm:$0xff]
    %v551 = vld [vmem:[#allocation10 + $0x48] sm:$0xff]
    %v552 = vld [vmem:[#allocation10 + $0x50] sm:$0xff]
    %v553 = vld [vmem:[#allocation10 + $0x58] sm:$0xff]
    %v554 = vld [vmem:[#allocation10 + $0x60] sm:$0xff]
    %v555 = vld [vmem:[#allocation10 + $0x68] sm:$0xff]
    %v556 = vld [vmem:[#allocation10 + $0x70] sm:$0xff]
    %v557 = vld [vmem:[#allocation10 + $0x78] sm:$0xff]
    %v558 = vld [vmem:[#allocation10 + $0x80] sm:$0xff]
    %v559 = vld [vmem:[#allocation10 + $0x88] sm:$0xff]
    %v560 = vld [vmem:[#allocation10 + $0x90] sm:$0xff]
    %v561 = vld [vmem:[#allocation10 + $0x98] sm:$0xff]
    %v562 = vld [vmem:[#allocation10 + $0xa0] sm:$0xff]
    %v563 = vld [vmem:[#allocation10 + $0xa8] sm:$0xff]
    %v564 = vld [vmem:[#allocation10 + $0xb0] sm:$0xff]
    %v565 = vld [vmem:[#allocation10 + $0xb8] sm:$0xff]
    %v566 = vld [vmem:[#allocation10 + $0xc0] sm:$0xff]
    %v567 = vld [vmem:[#allocation10 + $0xc8] sm:$0xff]
    %v568 = vld [vmem:[#allocation10 + $0xd0] sm:$0xff]
    %v569 = vld [vmem:[#allocation10 + $0xd8] sm:$0xff]
    %v570 = vld [vmem:[#allocation10 + $0xe0] sm:$0xff]
    %v571 = vld [vmem:[#allocation10 + $0xe8] sm:$0xff]
    %v572 = vld [vmem:[#allocation10 + $0xf0] sm:$0xff]
    %v573 = vld [vmem:[#allocation10 + $0xf8] sm:$0xff]
    %v574 = vld [vmem:[#allocation10 + $0x100] sm:$0xff]
    %v575 = vld [vmem:[#allocation10 + $0x108] sm:$0xff]
    %v576 = vld [vmem:[#allocation10 + $0x110] sm:$0xff]
    %v577 = vld [vmem:[#allocation10 + $0x118] sm:$0xff]
    %v578 = vld [vmem:[#allocation10 + $0x120] sm:$0xff]
    %v579 = vld [vmem:[#allocation10 + $0x128] sm:$0xff]
    %v580 = vld [vmem:[#allocation10 + $0x130] sm:$0xff]
    %v581 = vld [vmem:[#allocation10 + $0x138] sm:$0xff]
    %v582 = vld [vmem:[#allocation10 + $0x140] sm:$0xff]
    %v583 = vld [vmem:[#allocation10 + $0x148] sm:$0xff]
    %v584 = vld [vmem:[#allocation10 + $0x150] sm:$0xff]
    %v585 = vld [vmem:[#allocation10 + $0x158] sm:$0xff]
    %v586 = vld [vmem:[#allocation10 + $0x160] sm:$0xff]
    %v587 = vld [vmem:[#allocation10 + $0x168] sm:$0xff]
    %v588 = vld [vmem:[#allocation10 + $0x170] sm:$0xff]
    %v589 = vld [vmem:[#allocation10 + $0x178] sm:$0xff]
    %v590 = vld [vmem:[#allocation10 + $0x180] sm:$0xff]
    %v591 = vld [vmem:[#allocation10 + $0x188] sm:$0xff]
    %v592 = vld [vmem:[#allocation10 + $0x190] sm:$0xff]
    %v593 = vld [vmem:[#allocation10 + $0x198] sm:$0xff]
    %v594 = vld [vmem:[#allocation10 + $0x1a0] sm:$0xff]
    %v595 = vld [vmem:[#allocation10 + $0x1a8] sm:$0xff]
    %v596 = vld [vmem:[#allocation10 + $0x1b0] sm:$0xff]
    %v597 = vld [vmem:[#allocation10 + $0x1b8] sm:$0xff]
    %v598 = vld [vmem:[#allocation10 + $0x1c0] sm:$0xff]
    %v599 = vld [vmem:[#allocation10 + $0x1c8] sm:$0xff]
    %v600 = vld [vmem:[#allocation10 + $0x1d0] sm:$0xff]
    %v601 = vld [vmem:[#allocation10 + $0x1d8] sm:$0xff]
    %v602 = vld [vmem:[#allocation10 + $0x1e0] sm:$0xff]
    %v603 = vld [vmem:[#allocation10 + $0x1e8] sm:$0xff]
    %v604 = vld [vmem:[#allocation10 + $0x1f0] sm:$0xff]
    %v605 = vld [vmem:[#allocation10 + $0x1f8] sm:$0xff]
    %v606 = vld [vmem:[#allocation10 + $0x200] sm:$0xff]
    %v607 = vld [vmem:[#allocation10 + $0x208] sm:$0xff]
    %v608 = vld [vmem:[#allocation10 + $0x210] sm:$0xff]
    %v609 = vld [vmem:[#allocation10 + $0x218] sm:$0xff]
    %v610 = vld [vmem:[#allocation10 + $0x220] sm:$0xff]
    %v611 = vld [vmem:[#allocation10 + $0x228] sm:$0xff]
    %v612 = vld [vmem:[#allocation10 + $0x230] sm:$0xff]
    %v613 = vld [vmem:[#allocation10 + $0x238] sm:$0xff]
    %v614 = vld [vmem:[#allocation10 + $0x240] sm:$0xff]
    %v615 = vld [vmem:[#allocation10 + $0x248] sm:$0xff]
    %v616 = vld [vmem:[#allocation10 + $0x250] sm:$0xff]
    %v617 = vld [vmem:[#allocation10 + $0x258] sm:$0xff]
    %v618 = vld [vmem:[#allocation10 + $0x260] sm:$0xff]
    %v619 = vld [vmem:[#allocation10 + $0x268] sm:$0xff]
    %v620 = vld [vmem:[#allocation10 + $0x270] sm:$0xff]
    %v621 = vld [vmem:[#allocation10 + $0x278] sm:$0xff]
    %v622 = vld [vmem:[#allocation10 + $0x280] sm:$0xff]
    %v623 = vld [vmem:[#allocation10 + $0x288] sm:$0xff]
    %v624 = vld [vmem:[#allocation10 + $0x290] sm:$0xff]
    %v625 = vld [vmem:[#allocation10 + $0x298] sm:$0xff]
    %v626 = vld [vmem:[#allocation10 + $0x2a0] sm:$0xff]
    %v627 = vld [vmem:[#allocation10 + $0x2a8] sm:$0xff]
    %v628 = vld [vmem:[#allocation10 + $0x2b0] sm:$0xff]
    %v629 = vld [vmem:[#allocation10 + $0x2b8] sm:$0xff]
    %v630 = vld [vmem:[#allocation10 + $0x2c0] sm:$0xff]
    %v631 = vld [vmem:[#allocation10 + $0x2c8] sm:$0xff]
    %v632 = vld [vmem:[#allocation10 + $0x2d0] sm:$0xff]
    %v633 = vld [vmem:[#allocation10 + $0x2d8] sm:$0xff]
    %v634 = vld [vmem:[#allocation10 + $0x2e0] sm:$0xff]
    %v635 = vld [vmem:[#allocation10 + $0x2e8] sm:$0xff]
    %v636 = vld [vmem:[#allocation10 + $0x2f0] sm:$0xff]
    %v637 = vld [vmem:[#allocation10 + $0x2f8] sm:$0xff]
    %v638 = vld [vmem:[#allocation10 + $0x300] sm:$0xff]
    %v639 = vld [vmem:[#allocation10 + $0x308] sm:$0xff]
    %v640 = vld [vmem:[#allocation10 + $0x310] sm:$0xff]
    %v641 = vld [vmem:[#allocation10 + $0x318] sm:$0xff]
    %v642 = vld [vmem:[#allocation10 + $0x320] sm:$0xff]
    %v643 = vld [vmem:[#allocation10 + $0x328] sm:$0xff]
    %v644 = vld [vmem:[#allocation10 + $0x330] sm:$0xff]
    %v645 = vld [vmem:[#allocation10 + $0x338] sm:$0xff]
    %v646 = vld [vmem:[#allocation10 + $0x340] sm:$0xff]
    %v647 = vld [vmem:[#allocation10 + $0x348] sm:$0xff]
    %v648 = vld [vmem:[#allocation10 + $0x350] sm:$0xff]
    %v649 = vld [vmem:[#allocation10 + $0x358] sm:$0xff]
    %v650 = vld [vmem:[#allocation10 + $0x360] sm:$0xff]
    %v651 = vld [vmem:[#allocation10 + $0x368] sm:$0xff]
    %v652 = vld [vmem:[#allocation10 + $0x370] sm:$0xff]
    %v653 = vld [vmem:[#allocation10 + $0x378] sm:$0xff]
    %v654 = vld [vmem:[#allocation10 + $0x380] sm:$0xff]
    %v655 = vld [vmem:[#allocation10 + $0x388] sm:$0xff]
    %v656 = vld [vmem:[#allocation10 + $0x390] sm:$0xff]
    %v657 = vld [vmem:[#allocation10 + $0x398] sm:$0xff]
    %v658 = vld [vmem:[#allocation10 + $0x3a0] sm:$0xff]
    %v659 = vld [vmem:[#allocation10 + $0x3a8] sm:$0xff]
    %v660 = vld [vmem:[#allocation10 + $0x3b0] sm:$0xff]
    %v661 = vld [vmem:[#allocation10 + $0x3b8] sm:$0xff]
    %v662 = vld [vmem:[#allocation10 + $0x3c0] sm:$0xff]
    %v663 = vld [vmem:[#allocation10 + $0x3c8] sm:$0xff]
    %v664 = vld [vmem:[#allocation10 + $0x3d0] sm:$0xff]
    %v665 = vld [vmem:[#allocation10 + $0x3d8] sm:$0xff]
    %v666 = vld [vmem:[#allocation10 + $0x3e0] sm:$0xff]
    %v667 = vld [vmem:[#allocation10 + $0x3e8] sm:$0xff]
    %v668 = vld [vmem:[#allocation10 + $0x3f0] sm:$0xff]
    %v669 = vld [vmem:[#allocation10 + $0x3f8] sm:$0xff]
    %v670 = vld [vmem:[%s7] sm:$0xf]
    %v672 = vperm.slane %v670, 0
    %v673 = vperm.slane %v670, 1
    %v674 = vperm.slane %v670, 2
    %v675 = vperm.slane %v670, 3
    %680 = vmatpush.msra.mxu0 %v602
    %681 = vmatpush.msra.mxu0 %v598
    %682 = vmatpush.msra.mxu0 %v594
    %683 = vmatpush.msra.mxu0 %v590
    %684 = vmatpush.msra.mxu0 %v586
    %685 = vmatpush.msra.mxu0 %v582
    %686 = vmatpush.msra.mxu0 %v578
    %687 = vmatpush.msra.mxu0 %v574
    %688 = vmatpush.msra.mxu0 %v570
    %689 = vmatpush.msra.mxu0 %v566
    %690 = vmatpush.msra.mxu0 %v562
    %691 = vmatpush.msra.mxu0 %v558
    %692 = vmatpush.msra.mxu0 %v554
    %693 = vmatpush.msra.mxu0 %v550
    %694 = vmatpush.msra.mxu0 %v546
    %695 = vmatpush.msra.mxu0 %v542
    %696 = vmatmul.f32.gmra.mxu0 %v539
    %v697 = vpop.f32.mrf.mxu0
    %v698 = vadd.f32 %v672, %v697
    %699 = vdwg.mxu0
    %700 = vmatpush.msra.mxu0 %v666
    %701 = vmatpush.msra.mxu0 %v662
    %702 = vmatpush.msra.mxu0 %v658
    %703 = vmatpush.msra.mxu0 %v654
    %704 = vmatpush.msra.mxu0 %v650
    %705 = vmatpush.msra.mxu0 %v646
    %706 = vmatpush.msra.mxu0 %v642
    %707 = vmatpush.msra.mxu0 %v638
    %708 = vmatpush.msra.mxu0 %v634
    %709 = vmatpush.msra.mxu0 %v630
    %710 = vmatpush.msra.mxu0 %v626
    %711 = vmatpush.msra.mxu0 %v622
    %712 = vmatpush.msra.mxu0 %v618
    %713 = vmatpush.msra.mxu0 %v614
    %714 = vmatpush.msra.mxu0 %v610
    %715 = vmatpush.msra.mxu0 %v606
    %716 = vmatmul.f32.gmra.mxu0 %v176
    %v717 = vpop.f32.mrf.mxu0
    %v718 = vadd.f32 %v698, %v717
    %719 = vdwg.mxu0
    %720 = vmatpush.msra.mxu0 %v603
    %721 = vmatpush.msra.mxu0 %v599
    %722 = vmatpush.msra.mxu0 %v595
    %723 = vmatpush.msra.mxu0 %v591
    %724 = vmatpush.msra.mxu0 %v587
    %725 = vmatpush.msra.mxu0 %v583
    %726 = vmatpush.msra.mxu0 %v579
    %727 = vmatpush.msra.mxu0 %v575
    %728 = vmatpush.msra.mxu0 %v571
    %729 = vmatpush.msra.mxu0 %v567
    %730 = vmatpush.msra.mxu0 %v563
    %731 = vmatpush.msra.mxu0 %v559
    %732 = vmatpush.msra.mxu0 %v555
    %733 = vmatpush.msra.mxu0 %v551
    %734 = vmatpush.msra.mxu0 %v547
    %735 = vmatpush.msra.mxu0 %v543
    %736 = vmatmul.f32.gmra.mxu0 %v539
    %v737 = vpop.f32.mrf.mxu0
    %v738 = vadd.f32 %v673, %v737
    %739 = vdwg.mxu0
    %740 = vmatpush.msra.mxu0 %v667
    %741 = vmatpush.msra.mxu0 %v663
    %742 = vmatpush.msra.mxu0 %v659
    %743 = vmatpush.msra.mxu0 %v655
    %744 = vmatpush.msra.mxu0 %v651
    %745 = vmatpush.msra.mxu0 %v647
    %746 = vmatpush.msra.mxu0 %v643
    %747 = vmatpush.msra.mxu0 %v639
    %748 = vmatpush.msra.mxu0 %v635
    %749 = vmatpush.msra.mxu0 %v631
    %750 = vmatpush.msra.mxu0 %v627
    %751 = vmatpush.msra.mxu0 %v623
    %752 = vmatpush.msra.mxu0 %v619
    %753 = vmatpush.msra.mxu0 %v615
    %754 = vmatpush.msra.mxu0 %v611
    %755 = vmatpush.msra.mxu0 %v607
    %756 = vmatmul.f32.gmra.mxu0 %v176
    %v757 = vpop.f32.mrf.mxu0
    %v758 = vadd.f32 %v738, %v757
    %759 = vdwg.mxu0
    %760 = vmatpush.msra.mxu0 %v604
    %761 = vmatpush.msra.mxu0 %v600
    %762 = vmatpush.msra.mxu0 %v596
    %763 = vmatpush.msra.mxu0 %v592
    %764 = vmatpush.msra.mxu0 %v588
    %765 = vmatpush.msra.mxu0 %v584
    %766 = vmatpush.msra.mxu0 %v580
    %767 = vmatpush.msra.mxu0 %v576
    %768 = vmatpush.msra.mxu0 %v572
    %769 = vmatpush.msra.mxu0 %v568
    %770 = vmatpush.msra.mxu0 %v564
    %771 = vmatpush.msra.mxu0 %v560
    %772 = vmatpush.msra.mxu0 %v556
    %773 = vmatpush.msra.mxu0 %v552
    %774 = vmatpush.msra.mxu0 %v548
    %775 = vmatpush.msra.mxu0 %v544
    %776 = vmatmul.f32.gmra.mxu0 %v539
    %v777 = vpop.f32.mrf.mxu0
    %v778 = vadd.f32 %v674, %v777
    %779 = vdwg.mxu0
    %780 = vmatpush.msra.mxu0 %v668
    %781 = vmatpush.msra.mxu0 %v664
    %782 = vmatpush.msra.mxu0 %v660
    %783 = vmatpush.msra.mxu0 %v656
    %784 = vmatpush.msra.mxu0 %v652
    %785 = vmatpush.msra.mxu0 %v648
    %786 = vmatpush.msra.mxu0 %v644
    %787 = vmatpush.msra.mxu0 %v640
    %788 = vmatpush.msra.mxu0 %v636
    %789 = vmatpush.msra.mxu0 %v632
    %790 = vmatpush.msra.mxu0 %v628
    %791 = vmatpush.msra.mxu0 %v624
    %792 = vmatpush.msra.mxu0 %v620
    %793 = vmatpush.msra.mxu0 %v616
    %794 = vmatpush.msra.mxu0 %v612
    %795 = vmatpush.msra.mxu0 %v608
    %796 = vmatmul.f32.gmra.mxu0 %v176
    %v797 = vpop.f32.mrf.mxu0
    %v798 = vadd.f32 %v778, %v797
    %799 = vdwg.mxu0
    %800 = vmatpush.msra.mxu0 %v605
    %801 = vmatpush.msra.mxu0 %v601
    %802 = vmatpush.msra.mxu0 %v597
    %803 = vmatpush.msra.mxu0 %v593
    %804 = vmatpush.msra.mxu0 %v589
    %805 = vmatpush.msra.mxu0 %v585
    %806 = vmatpush.msra.mxu0 %v581
    %807 = vmatpush.msra.mxu0 %v577
    %808 = vmatpush.msra.mxu0 %v573
    %809 = vmatpush.msra.mxu0 %v569
    %810 = vmatpush.msra.mxu0 %v565
    %811 = vmatpush.msra.mxu0 %v561
    %812 = vmatpush.msra.mxu0 %v557
    %813 = vmatpush.msra.mxu0 %v553
    %814 = vmatpush.msra.mxu0 %v549
    %815 = vmatpush.msra.mxu0 %v545
    %816 = vmatmul.f32.gmra.mxu0 %v539
    %v817 = vpop.f32.mrf.mxu0
    %v818 = vadd.f32 %v675, %v817
    %819 = vdwg.mxu0
    %820 = vmatpush.msra.mxu0 %v669
    %821 = vmatpush.msra.mxu0 %v665
    %822 = vmatpush.msra.mxu0 %v661
    %823 = vmatpush.msra.mxu0 %v657
    %824 = vmatpush.msra.mxu0 %v653
    %825 = vmatpush.msra.mxu0 %v649
    %826 = vmatpush.msra.mxu0 %v645
    %827 = vmatpush.msra.mxu0 %v641
    %828 = vmatpush.msra.mxu0 %v637
    %829 = vmatpush.msra.mxu0 %v633
    %830 = vmatpush.msra.mxu0 %v629
    %831 = vmatpush.msra.mxu0 %v625
    %832 = vmatpush.msra.mxu0 %v621
    %833 = vmatpush.msra.mxu0 %v617
    %834 = vmatpush.msra.mxu0 %v613
    %835 = vmatpush.msra.mxu0 %v609
    %836 = vmatmul.f32.gmra.mxu0 %v176
    %v837 = vpop.f32.mrf.mxu0
    %v838 = vadd.f32 %v818, %v837
    %839 = vdwg.mxu0
    %v840 = vxor.u32 %v718, 2147483648
    %v841 = vmul.f32 %v840, 1.442695
    %v842 = vpow.pop %v841
    %v843 = vadd.f32 %v842, 1.0
    %v844 = vrcp.pop %v843
    %v845 = vmul.f32 %v843, %v844
    %v846 = vsub.f32 1.0, %v845
    %v847 = vmul.f32 %v844, %v846
    %v848 = vadd.f32 %v844, %v847
    %vm849 = vweird.f32 %v843
    %vm850 = vweird.f32 %v844
    %vm851 = vmor %vm849, %vm850
    %v852 = vsel %vm851, %v844, %v848
    %v853 = vand.u32 2147483647, %v843
    %vm854 = vcmp.eq.f32.partialorder %v853, 8.507059e+37
    %v855 = vand.u32 %v843, 2147483648
    %v856 = vor.u32 1.1754944e-38, %v855
    %v857 = vsel %vm854, %v856, %v852
    %v858 = vmul.f32 1.0, %v857
    %v859 = vxor.u32 %v758, 2147483648
    %v860 = vmul.f32 %v859, 1.442695
    %v861 = vpow.pop %v860
    %v862 = vadd.f32 %v861, 1.0
    %v863 = vrcp.pop %v862
    %v864 = vmul.f32 %v862, %v863
    %v865 = vsub.f32 1.0, %v864
    %v866 = vmul.f32 %v863, %v865
    %v867 = vadd.f32 %v863, %v866
    %vm868 = vweird.f32 %v862
    %vm869 = vweird.f32 %v863
    %vm870 = vmor %vm868, %vm869
    %v871 = vsel %vm870, %v863, %v867
    %v872 = vand.u32 2147483647, %v862
    %vm873 = vcmp.eq.f32.partialorder %v872, 8.507059e+37
    %v874 = vand.u32 %v862, 2147483648
    %v875 = vor.u32 1.1754944e-38, %v874
    %v876 = vsel %vm873, %v875, %v871
    %v877 = vmul.f32 1.0, %v876
    %v878 = vtanh.pop %v798
    %v879 = vxor.u32 %v838, 2147483648
    %v880 = vmul.f32 %v879, 1.442695
    %v881 = vpow.pop %v880
    %v882 = vadd.f32 %v881, 1.0
    %v883 = vrcp.pop %v882
    %v884 = vmul.f32 %v882, %v883
    %v885 = vsub.f32 1.0, %v884
    %v886 = vmul.f32 %v883, %v885
    %v887 = vadd.f32 %v883, %v886
    %vm888 = vweird.f32 %v882
    %vm889 = vweird.f32 %v883
    %vm890 = vmor %vm888, %vm889
    %v891 = vsel %vm890, %v883, %v887
    %v892 = vand.u32 2147483647, %v882
    %vm893 = vcmp.eq.f32.partialorder %v892, 8.507059e+37
    %v894 = vand.u32 %v882, 2147483648
    %v895 = vor.u32 1.1754944e-38, %v894
    %v896 = vsel %vm893, %v895, %v891
    %v897 = vmul.f32 1.0, %v896
    %v898 = vmul.f32 %v877, %v178
    %v899 = vmul.f32 %v858, %v878
    %v900 = vadd.f32 %v898, %v899
    %v901 = vtanh.pop %v900
    %v902 = vmul.f32 %v897, %v901
    %s903 = scalar_lea.vmem [#allocation14], 8
    %904 = vst [vmem:[%s903] sm:$0xff] %v902
    %s905 = scalar_lea.vmem [#allocation16], 8
    %906 = vst [vmem:[%s905] sm:$0xff] %v900
    %v907 = vld [vmem:[#allocation11] sm:$0xff]
    %v908 = vld [vmem:[#allocation11 + $0x8] sm:$0xff]
    %v909 = vld [vmem:[#allocation11 + $0x10] sm:$0xff]
    %v910 = vld [vmem:[#allocation11 + $0x18] sm:$0xff]
    %v911 = vld [vmem:[#allocation11 + $0x20] sm:$0xff]
    %v912 = vld [vmem:[#allocation11 + $0x28] sm:$0xff]
    %v913 = vld [vmem:[#allocation11 + $0x30] sm:$0xff]
    %v914 = vld [vmem:[#allocation11 + $0x38] sm:$0xff]
    %v915 = vld [vmem:[#allocation11 + $0x40] sm:$0xff]
    %v916 = vld [vmem:[#allocation11 + $0x48] sm:$0xff]
    %v917 = vld [vmem:[#allocation11 + $0x50] sm:$0xff]
    %v918 = vld [vmem:[#allocation11 + $0x58] sm:$0xff]
    %v919 = vld [vmem:[#allocation11 + $0x60] sm:$0xff]
    %v920 = vld [vmem:[#allocation11 + $0x68] sm:$0xff]
    %v921 = vld [vmem:[#allocation11 + $0x70] sm:$0xff]
    %v922 = vld [vmem:[#allocation11 + $0x78] sm:$0xff]
    %v923 = vld [vmem:[%s9] sm:$0x1]
    %v925 = vperm.slane %v923, 0
    %927 = vmatpush.msra.mxu0 %v922
    %928 = vmatpush.msra.mxu0 %v921
    %929 = vmatpush.msra.mxu0 %v920
    %930 = vmatpush.msra.mxu0 %v919
    %931 = vmatpush.msra.mxu0 %v918
    %932 = vmatpush.msra.mxu0 %v917
    %933 = vmatpush.msra.mxu0 %v916
    %934 = vmatpush.msra.mxu0 %v915
    %935 = vmatpush.msra.mxu0 %v914
    %936 = vmatpush.msra.mxu0 %v913
    %937 = vmatpush.msra.mxu0 %v912
    %938 = vmatpush.msra.mxu0 %v911
    %939 = vmatpush.msra.mxu0 %v910
    %940 = vmatpush.msra.mxu0 %v909
    %941 = vmatpush.msra.mxu0 %v908
    %942 = vmatpush.msra.mxu0 %v907
    %943 = vmatmul.f32.gmra.mxu0 %v902
    %v944 = vpop.f32.mrf.mxu0
    %v945 = vadd.f32 %v925, %v944
    %946 = vdwg.mxu0
    %947 = vst [vmem:[#allocation13] sm:$0xff] %v945
    // Predicated region
    $region66: #{tpu_custom_call.1} parent=1 // pred_check
      _
    $region67: #{tpu_custom_call.1} parent=1 // pred_check_branch
      %949 = sbr.rel (0) target = $region69
    $region68: #{tpu_custom_call.1} parent=1 // pred_region
      %951 = vsyncadd [#allocation4], 0
      %s953 = sshll.u32 [#allocation13], 4
      %s954 = int_to_ptr.vmem [resolvable:$true] %s953
      %s955 = sshll.u32 %s10, 4
      %s956 = int_to_ptr.hbm [resolvable:$true] %s955
      %958 = dma.vmem_to_hbm [thread:$0]  %s954, 128, %s956, [#allocation4]
    $region69: #{tpu_custom_call.1} parent=1 // pred_fallthru
      _
    // Predicated region
    $region70: #{tpu_custom_call.1} parent=1 // pred_check
      _
    $region71: #{tpu_custom_call.1} parent=1 // pred_check_branch
      %960 = sbr.rel (0) target = $region73
    $region72: #{tpu_custom_call.1} parent=1 // pred_region
      %962 = vsyncadd [#allocation15], 0
      %s963 = sshll.u32 [#allocation14], 4
      %s964 = int_to_ptr.vmem [resolvable:$true] %s963
      %s965 = sshll.u32 %s11, 4
      %s966 = int_to_ptr.hbm [resolvable:$true] %s965
      %971 = dma.vmem_to_hbm [thread:$0]  %s964, 256, %s966, [#allocation15], 128, 128, 8
    $region73: #{tpu_custom_call.1} parent=1 // pred_fallthru
      _
    // Predicated region
    $region74: #{tpu_custom_call.1} parent=1 // pred_check
      _
    $region75: #{tpu_custom_call.1} parent=1 // pred_check_branch
      %973 = sbr.rel (0) target = $region77
    $region76: #{tpu_custom_call.1} parent=1 // pred_region
      %975 = vsyncadd [#allocation15], 0
      %s976 = sshll.u32 [#allocation16], 4
      %s977 = int_to_ptr.vmem [resolvable:$true] %s976
      %s978 = sshll.u32 %s12, 4
      %s979 = int_to_ptr.hbm [resolvable:$true] %s978
      %984 = dma.vmem_to_hbm [thread:$0]  %s977, 256, %s979, [#allocation15], 128, 128, 8
    $region77: #{tpu_custom_call.1} parent=1 // pred_fallthru
      _
    // Predicated region
    $region78: #{tpu_custom_call.1} parent=1 // pred_check
      _
    $region79: #{tpu_custom_call.1} parent=1 // pred_check_branch
      %986 = sbr.rel (0) target = $region81
    $region80: #{tpu_custom_call.1} parent=1 // pred_region
      %988 = dma.done [#allocation4], 128
    $region81: #{tpu_custom_call.1} parent=1 // pred_fallthru
      _
    // Predicated region
    $region82: #{tpu_custom_call.1} parent=1 // pred_check
      _
    $region83: #{tpu_custom_call.1} parent=1 // pred_check_branch
      %990 = sbr.rel (0) target = $region85
    $region84: #{tpu_custom_call.1} parent=1 // pred_region
      %992 = dma.done [#allocation15], 256
    $region85: #{tpu_custom_call.1} parent=1 // pred_fallthru
      _
    // Predicated region
    $region86: #{tpu_custom_call.1} parent=1 // pred_check
      _
    $region87: #{tpu_custom_call.1} parent=1 // pred_check_branch
      %994 = sbr.rel (0) target = $region89
    $region88: #{tpu_custom_call.1} parent=1 // pred_region
      %996 = dma.done [#allocation15], 256
    $region89: #{tpu_custom_call.1} parent=1 // pred_fallthru
      _
    %997 = vsyncpa [#allocation3], 1
    %998 = vsyncpa [#allocation6], 1
    %999 = vsyncpa [#allocation9], 1
    %1000 = vsyncpa [#allocation12], 1
    %1001 = vsyncpa [#allocation4], 1
    %1002 = vsyncpa [#allocation15], 1

</llo_original>
